<compile_context>
chip_gen: v5e
topology: v5e:2x2
jax: 0.10.0
libtpu: 0.0.40
codegen_flags: <defaults>
</compile_context>

<pallas_src>
import functools
import math

import jax
import jax.numpy as jnp
from jax.experimental import pallas as pl
from jax.experimental.pallas import tpu as pltpu


def _derive_vmem_limit():
    """Per-generation scoped-VMEM budget: 3/4 of physical, capped at 96 MiB.
    v5e/v6e (128 MiB physical) -> 96 MiB; v7x (64 MiB physical) -> 48 MiB."""
    cap = None
    try:
        cap = getattr(pltpu.get_tpu_info(), "vmem_capacity_bytes", None)
    except Exception:
        cap = None
    if not cap:
        cap = 128 * 1024 * 1024
    return int(min(3 * cap // 4, 96 * 1024 * 1024))


_VMEM_LIMIT = _derive_vmem_limit()


# ---------------------------------------------------------------------------
# Linear projection kernel: y = x @ W + b   (W stored as (in, out), bf16)
# Grid: (M tiles, N tiles), both parallel.  Full-K contraction per tile, so no
# accumulator scratch and no init/finalize phases.
# ---------------------------------------------------------------------------
def _linear_kernel(x_ref, w_ref, b_ref, o_ref):
    acc = jnp.dot(x_ref[...].astype(jnp.bfloat16),
                  w_ref[...].astype(jnp.bfloat16),
                  preferred_element_type=jnp.float32)        # bf16 MXU, f32 acc
    o_ref[...] = (acc + b_ref[...]).astype(o_ref.dtype)


def linear(x2d, w, b, *, tm=256, tn=1024):
    """x2d: (M, Din) f32, w: (Din, Dout) bf16, b: (Dout,) f32 -> (M, Dout) f32."""
    M, Din = x2d.shape
    Dout = w.shape[1]
    tm = min(tm, M)
    w_bytes = w.size * w.dtype.itemsize
    if w_bytes <= 8 * 1024 * 1024 or Dout % 128 != 0:
        tn = Dout                        # weight resident in VMEM
    else:
        tn = min(tn, Dout)               # stream (Din, tn) column slabs once each
    grid = (pl.cdiv(M, tm), pl.cdiv(Dout, tn))

    cost = pl.CostEstimate(
        flops=2 * M * Din * Dout,
        transcendentals=0,
        bytes_accessed=4 * M * Din + 2 * Din * Dout + 4 * M * Dout + 4 * Dout,
    )
    return pl.pallas_call(
        _linear_kernel,
        out_shape=jax.ShapeDtypeStruct((M, Dout), x2d.dtype),
        grid_spec=pltpu.PrefetchScalarGridSpec(
            num_scalar_prefetch=0,
            grid=grid,
            in_specs=[
                pl.BlockSpec((tm, Din), lambda i, j: (i, 0)),
                pl.BlockSpec((Din, tn), lambda i, j: (0, j)),
                pl.BlockSpec((1, tn), lambda i, j: (0, j)),
            ],
            out_specs=pl.BlockSpec((tm, tn), lambda i, j: (i, j)),
        ),
        compiler_params=pltpu.CompilerParams(
            dimension_semantics=("parallel", "parallel"),
            vmem_limit_bytes=_VMEM_LIMIT,
        ),
        cost_estimate=cost,
    )(x2d, w, b.reshape(1, Dout))


# ---------------------------------------------------------------------------
# Fused attention + head-concat + output projection kernel.
# Refs (batch dim squeezed): q (tq, D), k/v (Skv, D), wo (D, D) bf16,
# bo (1, D), out (tq, D).  Heads live in D-columns — no head transpose.
# ---------------------------------------------------------------------------
def _mha_kernel(q_ref, k_ref, v_ref, wo_ref, bo_ref, o_ref, *, num_heads):
    d_model = q_ref.shape[-1]
    d_k = d_model // num_heads
    scale = 1.0 / math.sqrt(d_k)

    q = (q_ref[...] * scale).astype(jnp.bfloat16)            # (tq, D)
    k = k_ref[...].astype(jnp.bfloat16)                      # (Skv, D)
    v = v_ref[...].astype(jnp.bfloat16)                      # (Skv, D)

    heads = []
    for hh in range(num_heads):                              # static unroll
        cols = slice(hh * d_k, (hh + 1) * d_k)
        # scores_h = q_h @ k_h^T (NT dot on the MXU, bf16 in, f32 acc)
        s = jax.lax.dot_general(q[:, cols], k[:, cols],
                                (((1,), (1,)), ((), ())),
                                preferred_element_type=jnp.float32)  # (tq, Skv)
        # TODO(synk): masked path (additive -1e9 fill) goes here.
        m = jnp.max(s, axis=-1, keepdims=True)
        p = jnp.exp(s - m)                                    # unnormalized softmax
        denom = jnp.sum(p, axis=-1, keepdims=True)
        # TODO(synk): training-mode dropout on p via pltpu.prng_random_bits.
        o_h = jnp.dot(p.astype(jnp.bfloat16), v[:, cols],
                      preferred_element_type=jnp.float32)     # (tq, d_k)
        # Normalize AFTER the PV matmul: tq*d_k VPU mults instead of tq*Skv.
        o_h = o_h * pl.reciprocal(denom, approx=True)
        heads.append(o_h.astype(jnp.bfloat16))

    # Head-concat (same layout as torch's transpose(1,2).view) then a single
    # full-K (tq, D) @ (D, D) output projection; lane-dense (tq, D) store.
    concat = jnp.concatenate(heads, axis=-1)                  # (tq, D) bf16
    out = jnp.dot(concat, wo_ref[...].astype(jnp.bfloat16),
                  preferred_element_type=jnp.float32)
    o_ref[...] = (out + bo_ref[...]).astype(o_ref.dtype)


def _attention_pallas_call(args, in_specs, B, Sq, Skv, D, num_heads, tq, out_dtype):
    grid = (B, pl.cdiv(Sq, tq))
    cost = pl.CostEstimate(
        flops=4 * B * Sq * Skv * D + 2 * B * Sq * D * D,
        transcendentals=B * num_heads * Sq * Skv,
        bytes_accessed=8 * B * Sq * D + 8 * B * Skv * D + 2 * D * D + 4 * D,
    )
    return pl.pallas_call(
        functools.partial(_mha_kernel, num_heads=num_heads),
        out_shape=jax.ShapeDtypeStruct((B, Sq, D), out_dtype),
        grid_spec=pltpu.PrefetchScalarGridSpec(
            num_scalar_prefetch=0,
            grid=grid,
            in_specs=in_specs,
            out_specs=pl.BlockSpec((pl.Squeezed(), tq, D),
                                   lambda b, qi: (b, qi, 0)),
        ),
        compiler_params=pltpu.CompilerParams(
            dimension_semantics=("parallel", "parallel"),
            vmem_limit_bytes=_VMEM_LIMIT,
        ),
        cost_estimate=cost,
    )(*args)


def attention_from_fused_qkv(qkv, wo_bf16, bo, num_heads, *, tq=256):
    """qkv: (B, S, 3D) fused projection output.  Q/K/V selection is done by the
    BlockSpec index maps (no HBM slice/transpose between the two kernels)."""
    B, S, D3 = qkv.shape
    D = D3 // 3
    assert D % 128 == 0, "fused-qkv path requires lane-aligned d_model"
    tq = S if S <= tq else tq
    q_spec = pl.BlockSpec((pl.Squeezed(), tq, D), lambda b, qi: (b, qi, 0))
    k_spec = pl.BlockSpec((pl.Squeezed(), S, D), lambda b, qi: (b, 0, 1))
    v_spec = pl.BlockSpec((pl.Squeezed(), S, D), lambda b, qi: (b, 0, 2))
    wo_spec = pl.BlockSpec((D, D), lambda b, qi: (0, 0))
    bo_spec = pl.BlockSpec((1, D), lambda b, qi: (0, 0))
    return _attention_pallas_call(
        (qkv, qkv, qkv, wo_bf16, bo.reshape(1, D)),
        [q_spec, k_spec, v_spec, wo_spec, bo_spec],
        B, S, S, D, num_heads, tq, qkv.dtype)


def attention_with_output_proj(q, k, v, wo_bf16, bo, num_heads, *, tq=256):
    """q: (B, Sq, D); k, v: (B, Skv, D) (flat, NOT head-split) -> (B, Sq, D)."""
    B, Sq, D = q.shape
    Skv = k.shape[1]
    tq = Sq if Sq <= tq else tq
    q_spec = pl.BlockSpec((pl.Squeezed(), tq, D), lambda b, qi: (b, qi, 0))
    kv_spec = pl.BlockSpec((pl.Squeezed(), Skv, D), lambda b, qi: (b, 0, 0))
    wo_spec = pl.BlockSpec((D, D), lambda b, qi: (0, 0))
    bo_spec = pl.BlockSpec((1, D), lambda b, qi: (0, 0))
    return _attention_pallas_call(
        (q, k, v, wo_bf16, bo.reshape(1, D)),
        [q_spec, kv_spec, kv_spec, wo_spec, bo_spec],
        B, Sq, Skv, D, num_heads, tq, q.dtype)


# ---------------------------------------------------------------------------
# MultiHeadedAttention forward (eval mode, mask=None)
# ---------------------------------------------------------------------------
def init_params(key, h, d_model):
    """nn.Linear default init: U(-1/sqrt(in), 1/sqrt(in)); W stored as (in, out).
    Q/K/V weights are concatenated column-wise into a single (D, 3D) weight."""
    assert d_model % h == 0
    bound = 1.0 / math.sqrt(d_model)
    keys = jax.random.split(key, 8)
    ws, bs = [], []
    for i in range(3):  # q, k, v
        ws.append(jax.random.uniform(keys[2 * i], (d_model, d_model),
                                     jnp.float32, -bound, bound))
        bs.append(jax.random.uniform(keys[2 * i + 1], (d_model,),
                                     jnp.float32, -bound, bound))
    return {
        "h": h,
        "w_qkv": jnp.concatenate(ws, axis=1),        # (D, 3D)
        "b_qkv": jnp.concatenate(bs, axis=0),        # (3D,)
        "wo": jax.random.uniform(keys[6], (d_model, d_model),
                                 jnp.float32, -bound, bound),
        "bo": jax.random.uniform(keys[7], (d_model,),
                                 jnp.float32, -bound, bound),
    }


def multi_headed_attention(params, query, key, value):
    B, Sq, D = query.shape
    h = params["h"]
    assert D % h == 0
    # bf16 parameter operands for the MXU; accumulation stays f32 in-kernel.
    w_qkv = params["w_qkv"].astype(jnp.bfloat16)
    wo = params["wo"].astype(jnp.bfloat16)
    b_qkv, bo = params["b_qkv"], params["bo"]

    if (query is key) and (key is value):
        # Self-attention (GPT-1 usage): one fused QKV matmul (activation read
        # from HBM once); the attention kernel consumes (B, S, 3D) directly —
        # no wrapper-side transpose/slice round trip through HBM.
        qkv = linear(query.reshape(B * Sq, D), w_qkv, b_qkv).reshape(B, Sq, 3 * D)
        if D % 128 == 0:
            return attention_from_fused_qkv(qkv, wo, bo, h)
        q3 = qkv[:, :, 0 * D:1 * D]
        k3 = qkv[:, :, 1 * D:2 * D]
        v3 = qkv[:, :, 2 * D:3 * D]
        return attention_with_output_proj(q3, k3, v3, wo, bo, h)

    # Cross-attention: distinct inputs, possibly a different KV sequence length.
    def project(x, w, b):
        Bx, Sx, _ = x.shape
        return linear(x.reshape(Bx * Sx, D), w, b).reshape(Bx, Sx, D)

    q3 = project(query, w_qkv[:, 0 * D:1 * D], b_qkv[0 * D:1 * D])
    k3 = project(key, w_qkv[:, 1 * D:2 * D], b_qkv[1 * D:2 * D])
    v3 = project(value, w_qkv[:, 2 * D:3 * D], b_qkv[2 * D:3 * D])
    return attention_with_output_proj(q3, k3, v3, wo, bo, h)


# ---------------------------------------------------------------------------
# Pure-JAX f32 reference (module semantics; sanity check)
# ---------------------------------------------------------------------------
def reference(params, query, key, value):
    B, Sq, D = query.shape
    h = params["h"]
    d_k = D // h

    def project(x, w, b):
        Bx, Sx, _ = x.shape
        y = x.reshape(Bx * Sx, D) @ w + b
        return y.reshape(Bx, Sx, h, d_k).transpose(0, 2, 1, 3)

    wq, wk, wv = (params["w_qkv"][:, i * D:(i + 1) * D] for i in range(3))
    bq, bk, bv = (params["b_qkv"][i * D:(i + 1) * D] for i in range(3))
    q = project(query, wq, bq)
    k = project(key, wk, bk)
    v = project(value, wv, bv)
    scores = jnp.einsum("bhqd,bhkd->bhqk", q, k) / math.sqrt(d_k)
    p = jax.nn.softmax(scores, axis=-1)
    x = jnp.einsum("bhqk,bhkd->bhqd", p, v)
    x = x.transpose(0, 2, 1, 3).reshape(B * Sq, D)
    return (x @ params["wo"] + params["bo"]).reshape(B, Sq, D)


if __name__ == "__main__":
    # Small but lane-aligned: B=2, S=8, h=4, d_model=128 (d_k=32).
    B, S, h, d_model = 2, 8, 4, 128

    root = jax.random.PRNGKey(0)
    kp, kx, kk, kv = jax.random.split(root, 4)
    params = init_params(kp, h, d_model)

    x = jax.random.normal(kx, (B, S, d_model), jnp.float32)

    # Self-attention (fused-QKV path, Q/K/V selected by BlockSpec index maps).
    out_self = jax.block_until_ready(multi_headed_attention(params, x, x, x))
    ref_self = reference(params, x, x, x)
    assert out_self.shape == (B, S, d_model)
    assert jnp.allclose(out_self, ref_self, atol=2e-2, rtol=2e-2), "self-attn mismatch"

    # Cross-attention with a DIFFERENT KV length (separate-projection path).
    S_kv = 16
    key_in = jax.random.normal(kk, (B, S_kv, d_model), jnp.float32)
    value_in = jax.random.normal(kv, (B, S_kv, d_model), jnp.float32)
    out_cross = jax.block_until_ready(
        multi_headed_attention(params, x, key_in, value_in))
    ref_cross = reference(params, x, key_in, value_in)
    assert out_cross.shape == (B, S, d_model)
    assert jnp.allclose(out_cross, ref_cross, atol=2e-2, rtol=2e-2), "cross-attn mismatch"

    print("KERNEL_OK")
</pallas_src>

<mosaic_0001>
module attributes {stable_mosaic.version = 11 : i64} {
  func.func @_linear_kernel(%arg0: i32, %arg1: i32, %arg2: memref<16x128xf32, #tpu.memory_space<vmem>>, %arg3: memref<128x384xbf16, #tpu.memory_space<vmem>>, %arg4: memref<1x384xf32, #tpu.memory_space<vmem>>, %arg5: memref<16x384xf32, #tpu.memory_space<vmem>>) attributes {dimension_semantics = [#tpu.dimension_semantics<parallel>, #tpu.dimension_semantics<parallel>], iteration_bounds = array<i64: 1, 1>, scalar_prefetch = 0 : i64, scratch_operands = 0 : i64, tpu.core_type = #tpu.core_type<tc>, window_params = [{transform_indices = @transform_0, window_bounds = array<i64: 16, 128>}, {transform_indices = @transform_1, window_bounds = array<i64: 128, 384>}, {transform_indices = @transform_2, window_bounds = array<i64: 1, 384>}, {transform_indices = @transform_3, window_bounds = array<i64: 16, 384>}]} {
    %c0 = arith.constant 0 : index
    %c0_0 = arith.constant 0 : index
    %0 = vector.load %arg2[%c0, %c0_0] : memref<16x128xf32, #tpu.memory_space<vmem>>, vector<16x128xf32>
    %1 = arith.truncf %0 : vector<16x128xf32> to vector<16x128xbf16>
    %c0_1 = arith.constant 0 : index
    %c0_2 = arith.constant 0 : index
    %2 = vector.load %arg3[%c0_1, %c0_2] : memref<128x384xbf16, #tpu.memory_space<vmem>>, vector<128x384xbf16>
    %cst = arith.constant dense<0.000000e+00> : vector<16x384xf32>
    %3 = tpu.matmul %1, %2, %cst {dimension_numbers = #tpu.dot_dimension_numbers<[1], [0], [0], [1], [0, 0, 1, 1], [], []>} : vector<16x128xbf16>, vector<128x384xbf16>, vector<16x384xf32> -> vector<16x384xf32>
    %c0_3 = arith.constant 0 : index
    %c0_4 = arith.constant 0 : index
    %4 = vector.load %arg4[%c0_3, %c0_4] : memref<1x384xf32, #tpu.memory_space<vmem>>, vector<1x384xf32>
    %5 = vector.broadcast %4 : vector<1x384xf32> to vector<16x384xf32>
    %6 = arith.addf %3, %5 : vector<16x384xf32>
    %c0_5 = arith.constant 0 : index
    %c0_6 = arith.constant 0 : index
    %7 = vector.load %arg5[%c0_5, %c0_6] : memref<16x384xf32, #tpu.memory_space<vmem>>, vector<16x384xf32>
    tpu.vector_store %arg5[%c0_5, %c0_6], %6 {strides = array<i32>} : memref<16x384xf32, #tpu.memory_space<vmem>>, vector<16x384xf32>,
    return
  }
  func.func @transform_0(%arg0: i32, %arg1: i32) -> (i32, i32) {
    %c0_i32 = arith.constant 0 : i32
    %c0_i32_0 = arith.constant 0 : i32
    return %arg0, %c0_i32 : i32, i32
  }
  func.func @transform_1(%arg0: i32, %arg1: i32) -> (i32, i32) {
    %c0_i32 = arith.constant 0 : i32
    %c0_i32_0 = arith.constant 0 : i32
    return %c0_i32, %arg1 : i32, i32
  }
  func.func @transform_2(%arg0: i32, %arg1: i32) -> (i32, i32) {
    %c0_i32 = arith.constant 0 : i32
    %c0_i32_0 = arith.constant 0 : i32
    return %c0_i32, %arg1 : i32, i32
  }
  func.func @transform_3(%arg0: i32, %arg1: i32) -> (i32, i32) {
    %c0_i32 = arith.constant 0 : i32
    return %arg0, %arg1 : i32, i32
  }
}

</mosaic_0001>

<llo_original>
// kernel: tpu_custom_call.1
$region0: #{tpu_custom_call.1}
  #allocation0 [shape = 'u32[]', space=smem, size = 0x4, offset = 0x4, fixed_abs, tag = 'smem constant byte address 0x4 - core index']
  #allocation1 [shape = 'u32[72,128]{1,0:T(1,128)}', space=vmem, size = 0x9000, scoped, tag = 'internal scratch']
  %s0 = inlined_call_operand.hbm [shape: f32[16,128], index: 0, kind: input, shape index: {}]
  %s1 = inlined_call_operand.hbm [shape: bf16[128,384], index: 1, kind: input, shape index: {}]
  %s2 = inlined_call_operand.hbm [shape: f32[1,384], index: 2, kind: input, shape index: {}]
  %s3 = inlined_call_operand.hbm [shape: f32[16,384], index: 3, kind: output, shape index: {}]
  %s4 = sld [smem:[#allocation0]]
  $region34: #{tpu_custom_call.1} parent=0
    _
  %s6 = ssub.s32 1, %s4
  %s7 = scalar_select 0, %s6, %s4
  $region1: #{tpu_custom_call.1} parent=0
    #allocation2 [shape = 'u8[8192]{0}', space=vmem, size = 0x2000, scoped, tag = 'input window, operand 0, single buffered']
    #allocation3 [shape = 's32[1]{0}', space=sflag, size = 0x4, scoped, tag = 'scoped memory for tpu_custom_call.1']
    #allocation4 [shape = 's32[1]{0}', space=sflag, size = 0x4, scoped, tag = 'scoped memory for tpu_custom_call.1']
    #allocation5 [shape = 'u8[98304]{0}', space=vmem, size = 0x18000, scoped, tag = 'input window, operand 1, single buffered']
    #allocation6 [shape = 's32[1]{0}', space=sflag, size = 0x4, scoped, tag = 'scoped memory for tpu_custom_call.1']
    #allocation7 [shape = 'u8[1536]{0}', space=vmem, size = 0x800, scoped, tag = 'input window, operand 2, single buffered']
    #allocation8 [shape = 'u8[24576]{0}', space=vmem, size = 0x6000, scoped, tag = 'output window, operand 0, single buffered']
    %8 = vsyncpa [#allocation3], 0
    %9 = vsyncpa [#allocation6], 0
    %10 = vsyncpa [#allocation4], 0
    // Predicated region
    $region2: #{tpu_custom_call.1} parent=1 // pred_check
      _
    $region3: #{tpu_custom_call.1} parent=1 // pred_check_branch
      %12 = sbr.rel (0) target = $region5
    $region4: #{tpu_custom_call.1} parent=1 // pred_region
      %14 = vsyncadd [#allocation3], 0
      %s15 = sshll.u32 %s0, 4
      %s16 = int_to_ptr.hbm [resolvable:$true] %s15
      %s17 = sshll.u32 [#allocation2], 4
      %s18 = int_to_ptr.vmem [resolvable:$true] %s17
      %23 = dma.hbm_to_vmem [thread:$0]  %s16, 256, %s18, [#allocation3], 128, 128, 8
    $region5: #{tpu_custom_call.1} parent=1 // pred_fallthru
      _
    // Predicated region
    $region6: #{tpu_custom_call.1} parent=1 // pred_check
      _
    $region7: #{tpu_custom_call.1} parent=1 // pred_check_branch
      %25 = sbr.rel (0) target = $region9
    $region8: #{tpu_custom_call.1} parent=1 // pred_region
      %27 = vsyncadd [#allocation6], 0
      %s28 = sshll.u32 %s1, 4
      %s29 = int_to_ptr.hbm [resolvable:$true] %s28
      %s30 = sshll.u32 [#allocation5], 4
      %s31 = int_to_ptr.vmem [resolvable:$true] %s30
      %36 = dma.hbm_to_vmem [thread:$0]  %s29, 3072, %s31, [#allocation6], 192, 192, 12
    $region9: #{tpu_custom_call.1} parent=1 // pred_fallthru
      _
    // Predicated region
    $region10: #{tpu_custom_call.1} parent=1 // pred_check
      _
    $region11: #{tpu_custom_call.1} parent=1 // pred_check_branch
      %38 = sbr.rel (0) target = $region13
    $region12: #{tpu_custom_call.1} parent=1 // pred_region
      %40 = vsyncadd [#allocation6], 0
      %s42 = sshll.u32 %s2, 4
      %s43 = int_to_ptr.hbm [resolvable:$true] %s42
      %s44 = sshll.u32 [#allocation7], 4
      %s45 = int_to_ptr.vmem [resolvable:$true] %s44
      %47 = dma.hbm_to_vmem [thread:$0]  %s43, 48, %s45, [#allocation6]
    $region13: #{tpu_custom_call.1} parent=1 // pred_fallthru
      _
    // Predicated region
    $region14: #{tpu_custom_call.1} parent=1 // pred_check
      _
    $region15: #{tpu_custom_call.1} parent=1 // pred_check_branch
      %49 = sbr.rel (0) target = $region17
    $region16: #{tpu_custom_call.1} parent=1 // pred_region
      %51 = dma.done [#allocation3], 256
    $region17: #{tpu_custom_call.1} parent=1 // pred_fallthru
      _
    // Predicated region
    $region18: #{tpu_custom_call.1} parent=1 // pred_check
      _
    $region19: #{tpu_custom_call.1} parent=1 // pred_check_branch
      %53 = sbr.rel (0) target = $region21
    $region20: #{tpu_custom_call.1} parent=1 // pred_region
      %55 = dma.done [#allocation6], 3072
    $region21: #{tpu_custom_call.1} parent=1 // pred_fallthru
      _
    // Predicated region
    $region22: #{tpu_custom_call.1} parent=1 // pred_check
      _
    $region23: #{tpu_custom_call.1} parent=1 // pred_check_branch
      %57 = sbr.rel (0) target = $region25
    $region24: #{tpu_custom_call.1} parent=1 // pred_region
      %59 = dma.done [#allocation6], 48
    $region25: #{tpu_custom_call.1} parent=1 // pred_fallthru
      _
    %v60 = vld [vmem:[#allocation2] sm:$0xff]
    %v61 = vld [vmem:[#allocation2 + $0x8] sm:$0xff]
    %v62 = vpack.c.bf16 %v61, %v60
    %v63 = vld [vmem:[#allocation5] sm:$0xff]
    %v64 = vld [vmem:[#allocation5 + $0x8] sm:$0xf]
    %v65 = vld [vmem:[#allocation5 + $0xc] sm:$0xff]
    %v66 = vld [vmem:[#allocation5 + $0x14] sm:$0xf]
    %v67 = vld [vmem:[#allocation5 + $0x18] sm:$0xff]
    %v68 = vld [vmem:[#allocation5 + $0x20] sm:$0xf]
    %v69 = vld [vmem:[#allocation5 + $0x24] sm:$0xff]
    %v70 = vld [vmem:[#allocation5 + $0x2c] sm:$0xf]
    %v71 = vld [vmem:[#allocation5 + $0x30] sm:$0xff]
    %v72 = vld [vmem:[#allocation5 + $0x38] sm:$0xf]
    %v73 = vld [vmem:[#allocation5 + $0x3c] sm:$0xff]
    %v74 = vld [vmem:[#allocation5 + $0x44] sm:$0xf]
    %v75 = vld [vmem:[#allocation5 + $0x48] sm:$0xff]
    %v76 = vld [vmem:[#allocation5 + $0x50] sm:$0xf]
    %v77 = vld [vmem:[#allocation5 + $0x54] sm:$0xff]
    %v78 = vld [vmem:[#allocation5 + $0x5c] sm:$0xf]
    %v79 = vld [vmem:[#allocation5 + $0x60] sm:$0xff]
    %v80 = vld [vmem:[#allocation5 + $0x68] sm:$0xf]
    %v81 = vld [vmem:[#allocation5 + $0x6c] sm:$0xff]
    %v82 = vld [vmem:[#allocation5 + $0x74] sm:$0xf]
    %v83 = vld [vmem:[#allocation5 + $0x78] sm:$0xff]
    %v84 = vld [vmem:[#allocation5 + $0x80] sm:$0xf]
    %v85 = vld [vmem:[#allocation5 + $0x84] sm:$0xff]
    %v86 = vld [vmem:[#allocation5 + $0x8c] sm:$0xf]
    %v87 = vld [vmem:[#allocation5 + $0x90] sm:$0xff]
    %v88 = vld [vmem:[#allocation5 + $0x98] sm:$0xf]
    %v89 = vld [vmem:[#allocation5 + $0x9c] sm:$0xff]
    %v90 = vld [vmem:[#allocation5 + $0xa4] sm:$0xf]
    %v91 = vld [vmem:[#allocation5 + $0xa8] sm:$0xff]
    %v92 = vld [vmem:[#allocation5 + $0xb0] sm:$0xf]
    %v93 = vld [vmem:[#allocation5 + $0xb4] sm:$0xff]
    %v94 = vld [vmem:[#allocation5 + $0xbc] sm:$0xf]
    %v95 = vld [vmem:[#allocation7] sm:$0x7]
    %v97 = vperm.slane %v95, 0
    %v98 = vperm.slane %v95, 1
    %v99 = vperm.slane %v95, 2
    %v135 = vunpack.c.l.b16 %v63
    %v136 = vunpack.c.h.b16 %v63
    %v137 = vunpack.c.l.b16 %v64
    %v138 = vunpack.c.l.b16 %v65
    %v139 = vunpack.c.h.b16 %v65
    %v140 = vunpack.c.l.b16 %v66
    %v141 = vunpack.c.l.b16 %v67
    %v142 = vunpack.c.h.b16 %v67
    %v143 = vunpack.c.l.b16 %v68
    %v144 = vunpack.c.l.b16 %v69
    %v145 = vunpack.c.h.b16 %v69
    %v146 = vunpack.c.l.b16 %v70
    %v147 = vunpack.c.l.b16 %v71
    %v148 = vunpack.c.h.b16 %v71
    %v149 = vunpack.c.l.b16 %v72
    %v150 = vunpack.c.l.b16 %v73
    %v151 = vunpack.c.h.b16 %v73
    %v152 = vunpack.c.l.b16 %v74
    %v153 = vunpack.c.l.b16 %v75
    %v154 = vunpack.c.h.b16 %v75
    %v155 = vunpack.c.l.b16 %v76
    %v156 = vunpack.c.l.b16 %v77
    %v157 = vunpack.c.h.b16 %v77
    %v158 = vunpack.c.l.b16 %v78
    %v159 = vunpack.c.l.b16 %v79
    %v160 = vunpack.c.h.b16 %v79
    %v161 = vunpack.c.l.b16 %v80
    %v162 = vunpack.c.l.b16 %v81
    %v163 = vunpack.c.h.b16 %v81
    %v164 = vunpack.c.l.b16 %v82
    %v165 = vunpack.c.l.b16 %v83
    %v166 = vunpack.c.h.b16 %v83
    %v167 = vunpack.c.l.b16 %v84
    %v168 = vunpack.c.l.b16 %v85
    %v169 = vunpack.c.h.b16 %v85
    %v170 = vunpack.c.l.b16 %v86
    %v171 = vunpack.c.l.b16 %v87
    %v172 = vunpack.c.h.b16 %v87
    %v173 = vunpack.c.l.b16 %v88
    %v174 = vunpack.c.l.b16 %v89
    %v175 = vunpack.c.h.b16 %v89
    %v176 = vunpack.c.l.b16 %v90
    %v177 = vunpack.c.l.b16 %v91
    %v178 = vunpack.c.h.b16 %v91
    %v179 = vunpack.c.l.b16 %v92
    %v180 = vunpack.c.l.b16 %v93
    %v181 = vunpack.c.h.b16 %v93
    %v182 = vunpack.c.l.b16 %v94
    %v183 = vpack.c.b16 %v138, %v135
    %v184 = vpack.c.b16 %v139, %v136
    %v185 = vpack.c.b16 %v140, %v137
    %v186 = vpack.c.b16 %v144, %v141
    %v187 = vpack.c.b16 %v145, %v142
    %v188 = vpack.c.b16 %v146, %v143
    %v189 = vpack.c.b16 %v150, %v147
    %v190 = vpack.c.b16 %v151, %v148
    %v191 = vpack.c.b16 %v152, %v149
    %v192 = vpack.c.b16 %v156, %v153
    %v193 = vpack.c.b16 %v157, %v154
    %v194 = vpack.c.b16 %v158, %v155
    %v195 = vpack.c.b16 %v162, %v159
    %v196 = vpack.c.b16 %v163, %v160
    %v197 = vpack.c.b16 %v164, %v161
    %v198 = vpack.c.b16 %v168, %v165
    %v199 = vpack.c.b16 %v169, %v166
    %v200 = vpack.c.b16 %v170, %v167
    %v201 = vpack.c.b16 %v174, %v171
    %v202 = vpack.c.b16 %v175, %v172
    %v203 = vpack.c.b16 %v176, %v173
    %v204 = vpack.c.b16 %v180, %v177
    %v205 = vpack.c.b16 %v181, %v178
    %v206 = vpack.c.b16 %v182, %v179
    %231 = vmatpush.bf16.msra.mxu0 %v204
    %232 = vmatpush.bf16.msra.mxu0 %v201
    %233 = vmatpush.bf16.msra.mxu0 %v198
    %234 = vmatpush.bf16.msra.mxu0 %v195
    %235 = vmatpush.bf16.msra.mxu0 %v192
    %236 = vmatpush.bf16.msra.mxu0 %v189
    %237 = vmatpush.bf16.msra.mxu0 %v186
    %238 = vmatpush.bf16.msra.mxu0 %v183
    %239 = vmatmul.bf16.gmra.mxu0 %v62
    %v240 = vpop.f32.mrf.mxu0
    %v241 = vadd.f32 %v97, %v240
    %v242 = vpop.f32.mrf.mxu0
    %v243 = vadd.f32 %v97, %v242
    %244 = vdwg.mxu0
    %245 = vmatpush.bf16.msra.mxu0 %v205
    %246 = vmatpush.bf16.msra.mxu0 %v202
    %247 = vmatpush.bf16.msra.mxu0 %v199
    %248 = vmatpush.bf16.msra.mxu0 %v196
    %249 = vmatpush.bf16.msra.mxu0 %v193
    %250 = vmatpush.bf16.msra.mxu0 %v190
    %251 = vmatpush.bf16.msra.mxu0 %v187
    %252 = vmatpush.bf16.msra.mxu0 %v184
    %253 = vmatmul.bf16.gmra.mxu0 %v62
    %v254 = vpop.f32.mrf.mxu0
    %v255 = vadd.f32 %v98, %v254
    %v256 = vpop.f32.mrf.mxu0
    %v257 = vadd.f32 %v98, %v256
    %258 = vdwg.mxu0
    %259 = vmatpush.bf16.msra.mxu0 %v206
    %260 = vmatpush.bf16.msra.mxu0 %v203
    %261 = vmatpush.bf16.msra.mxu0 %v200
    %262 = vmatpush.bf16.msra.mxu0 %v197
    %263 = vmatpush.bf16.msra.mxu0 %v194
    %264 = vmatpush.bf16.msra.mxu0 %v191
    %265 = vmatpush.bf16.msra.mxu0 %v188
    %266 = vmatpush.bf16.msra.mxu0 %v185
    %267 = vmatmul.bf16.gmra.mxu0 %v62
    %v268 = vpop.f32.mrf.mxu0
    %v269 = vadd.f32 %v99, %v268
    %v270 = vpop.f32.mrf.mxu0
    %v271 = vadd.f32 %v99, %v270
    %272 = vdwg.mxu0
    %273 = vst [vmem:[#allocation8] sm:$0xff] %v241
    %274 = vst [vmem:[#allocation8 + $0x8] sm:$0xff] %v255
    %275 = vst [vmem:[#allocation8 + $0x10] sm:$0xff] %v269
    %276 = vst [vmem:[#allocation8 + $0x18] sm:$0xff] %v243
    %277 = vst [vmem:[#allocation8 + $0x20] sm:$0xff] %v257
    %278 = vst [vmem:[#allocation8 + $0x28] sm:$0xff] %v271
    // Predicated region
    $region26: #{tpu_custom_call.1} parent=1 // pred_check
      _
    $region27: #{tpu_custom_call.1} parent=1 // pred_check_branch
      %280 = sbr.rel (0) target = $region29
    $region28: #{tpu_custom_call.1} parent=1 // pred_region
      %282 = vsyncadd [#allocation4], 0
      %s283 = sshll.u32 [#allocation8], 4
      %s284 = int_to_ptr.vmem [resolvable:$true] %s283
      %s285 = sshll.u32 %s3, 4
      %s286 = int_to_ptr.hbm [resolvable:$true] %s285
      %291 = dma.vmem_to_hbm [thread:$0]  %s284, 768, %s286, [#allocation4], 384, 384, 24
    $region29: #{tpu_custom_call.1} parent=1 // pred_fallthru
      _
    // Predicated region
    $region30: #{tpu_custom_call.1} parent=1 // pred_check
      _
    $region31: #{tpu_custom_call.1} parent=1 // pred_check_branch
      %293 = sbr.rel (0) target = $region33
    $region32: #{tpu_custom_call.1} parent=1 // pred_region
      %295 = dma.done [#allocation4], 768
    $region33: #{tpu_custom_call.1} parent=1 // pred_fallthru
      _
    %296 = vsyncpa [#allocation3], 1
    %297 = vsyncpa [#allocation6], 1
    %298 = vsyncpa [#allocation4], 1

</llo_original>
